<compile_context>
chip_gen: v6e
topology: v6e:2x2x1
jax: 0.10.0
libtpu: 0.0.40
codegen_flags: <defaults>
</compile_context>

<pallas_src>
import jax
import jax.numpy as jnp
from jax.experimental import pallas as pl
from jax.experimental.pallas import tpu as pltpu

LANE = 128
_MIB = 1024 * 1024


def _cdiv(a, b):
    return -(-a // b)


def _round_up(n, m):
    return ((n + m - 1) // m) * m


def _pad2(a, rows, cols):
    return jnp.pad(a, ((0, rows - a.shape[0]), (0, cols - a.shape[1])))


def _make_mlp_kernel(has_t, use_bf16):
    cdt = jnp.bfloat16 if use_bf16 else None

    def _cast(a):
        return a.astype(cdt) if cdt is not None else a

    def kernel(*refs):
        if has_t:
            (x_ref, t_ref, w1x_ref, w1t_ref, b1_ref,
             w2_ref, b2_ref, w3_ref, b3_ref, o_ref) = refs
        else:
            (x_ref, w1x_ref, b1_ref,
             w2_ref, b2_ref, w3_ref, b3_ref, o_ref) = refs

        # lin_1 (concat fused as a split matmul) + bias + relu
        h = jnp.dot(_cast(x_ref[...]), w1x_ref[...],
                    preferred_element_type=jnp.float32)
        if has_t:
            h = h + jnp.dot(_cast(t_ref[...]), w1t_ref[...],
                            preferred_element_type=jnp.float32)
        h = jnp.maximum(h + b1_ref[...], 0.0)

        # residual: h = h + relu(lin_2(h))      (elementwise kept in f32)
        h2 = jnp.dot(_cast(h), w2_ref[...],
                     preferred_element_type=jnp.float32) + b2_ref[...]
        h = h + jnp.maximum(h2, 0.0)

        # lin_3
        y = jnp.dot(_cast(h), w3_ref[...],
                    preferred_element_type=jnp.float32) + b3_ref[...]
        o_ref[...] = y.astype(o_ref.dtype)

    return kernel


def _vmem_budget_and_limit():
    """Generation-aware scoped-VMEM request + kernel-side accounting budget."""
    cap = 64 * _MIB  # conservative fallback (v7x per-TC VMEM) if the query fails
    try:
        info = pltpu.get_tpu_info()
        cap = int(getattr(info, "vmem_capacity_bytes", cap))
    except Exception:
        pass
    limit = (cap * 3) // 4                      # ~96 MiB on v5e/v6e, ~48 MiB/TC on v7x
    budget = max(limit - 6 * _MIB, limit // 2)  # slack for compiler-internal scratch
    return budget, limit


def _max_tile_b(budget, Dx, Dt, Hp, Dp_eff, w_item, x_item, out_item,
                use_bf16, act_buffers):
    """Largest batch tile that fits the VMEM budget (weights single-buffered)."""
    w_fixed = ((Dx + Dt) * Hp + Hp * Hp + Hp * Dp_eff) * w_item \
        + (2 * Hp + Dp_eff) * 4                       # biases (f32)
    per_row = (act_buffers * (Dx + Dt) * x_item       # pipelined activation buffers
               + 2 * Dp_eff * out_item                # double-buffered output block
               + 3 * Hp * 4                           # f32 h / h2 intermediates
               + Dp_eff * 4)                          # f32 y before cast/store
    if use_bf16:
        per_row += (Dx + Dt) * 2 + 2 * Hp * 2         # in-kernel bf16 casts of x/t, h
    avail = budget - w_fixed
    if avail < per_row * 8:
        return 0                                      # resident weights don't fit
    tb = int(avail // per_row)
    if tb >= 16:
        tb = (tb // 16) * 16
    else:
        tb = 8
    return min(tb, 4096)


def _align_tile(tb, B):
    tb = min(tb, B)
    if tb >= B:
        return B                      # full-dim block is always a legal block shape
    if tb >= 16:
        return (tb // 16) * 16        # bf16 sublane pack
    return max(8, (tb // 8) * 8)


def _select_tile_b(B, tb_max):
    """As large as VMEM allows, preferring a small, even number of grid steps."""
    if tb_max <= 0:
        return 0
    cap = min(tb_max, B)
    full = _align_tile(cap, B)
    if B < 32:
        return full
    prefs = (4, 6, 8, 2) if B >= 64 else (2, 4)
    for n in prefs:
        cand = _round_up(_cdiv(B, n), 16)
        if cand <= cap and _cdiv(B, cand) == n:
            return cand
    steps = _cdiv(B, full)
    if steps > 1 and steps % 2 == 1:
        # VMEM-limited: nudge the tile down so the step count is even (v7x megacore)
        cand = _round_up(_cdiv(B, steps + 1), 16)
        if 16 <= cand <= cap and _cdiv(B, cand) % 2 == 0:
            return cand
    return full


def mlp_forward(x, params, t=None, *, tile_b=None, use_bf16=True,
                pad_out=None, act_buffers=2):
    """Fused MLP forward. x: [B, Dx], t: optional [B, Dt] (concat fused in-kernel).

    Note: with use_bf16=True the MXU inputs (weights and activations) are cast to
    bf16 while accumulation and all elementwise math stay f32.
    """
    w1, b1, w2, b2, w3, b3 = params
    B, Dx = x.shape
    Din, H = w1.shape
    Dout = w3.shape[1]
    has_t = t is not None
    Dt = Din - Dx if has_t else 0
    if has_t:
        assert t.shape == (B, Dt), (t.shape, (B, Dt))
    else:
        assert Dx == Din

    Hp = _round_up(H, LANE)
    if pad_out is None:
        # Lane-dense (unmasked) output stores only when padding costs < 2x write
        # bytes; for tiny Dout the masked store beats inflated HBM traffic + slice.
        pad_out = Dout >= LANE
    Dp = _round_up(Dout, LANE) if pad_out else Dout

    wdt = jnp.bfloat16 if use_bf16 else w1.dtype
    w_item = 2 if use_bf16 else jnp.dtype(w1.dtype).itemsize
    x_item = x.dtype.itemsize
    out_item = x.dtype.itemsize

    budget, vmem_limit = _vmem_budget_and_limit()
    tb_max = _max_tile_b(budget, Dx, Dt, Hp, Dp, w_item, x_item, out_item,
                         use_bf16, act_buffers)
    if tb_max <= 0:
        # TODO(synk): K/N-tile the resident W2/W3 GEMMs (grid (i, j, k) + f32 VMEM
        # accumulator with pl.when init/finalize) for hidden sizes whose weights
        # exceed the per-core VMEM budget; fall back to plain XLA for now.
        return mlp_reference(x, params, t).astype(x.dtype)

    if tile_b is None:
        tile_b = _select_tile_b(B, tb_max)
    else:
        tile_b = _align_tile(min(int(tile_b), tb_max), B)
    grid = (_cdiv(B, tile_b),)

    # Zero-padding preserves the math exactly (padded hidden cols stay 0 through
    # bias/relu/residual; padded W3 rows are 0; padded output cols sliced away).
    w1x = _pad2(w1[:Dx], Dx, Hp).astype(wdt)
    b1p = _pad2(b1.reshape(1, -1), 1, Hp).astype(jnp.float32)
    w2p = _pad2(w2, Hp, Hp).astype(wdt)
    b2p = _pad2(b2.reshape(1, -1), 1, Hp).astype(jnp.float32)
    w3p = _pad2(w3, Hp, Dp).astype(wdt)
    b3p = _pad2(b3.reshape(1, -1), 1, Dp).astype(jnp.float32)

    wconst = pl.Buffered(1)          # constant index_map -> no re-fetch, 1 buffer
    abuf = pl.Buffered(act_buffers)  # activations: 2 (default) or 3 if DMA exposed

    args = [x]
    in_specs = [pl.BlockSpec((tile_b, Dx), lambda i: (i, 0), pipeline_mode=abuf)]
    if has_t:
        args.append(t)
        in_specs.append(pl.BlockSpec((tile_b, Dt), lambda i: (i, 0),
                                     pipeline_mode=abuf))
    args.append(w1x)
    in_specs.append(pl.BlockSpec((Dx, Hp), lambda i: (0, 0), pipeline_mode=wconst))
    if has_t:
        w1t = _pad2(w1[Dx:], Dt, Hp).astype(wdt)
        args.append(w1t)
        in_specs.append(pl.BlockSpec((Dt, Hp), lambda i: (0, 0),
                                     pipeline_mode=wconst))
    args += [b1p, w2p, b2p, w3p, b3p]
    in_specs += [
        pl.BlockSpec((1, Hp), lambda i: (0, 0), pipeline_mode=wconst),
        pl.BlockSpec((Hp, Hp), lambda i: (0, 0), pipeline_mode=wconst),
        pl.BlockSpec((1, Hp), lambda i: (0, 0), pipeline_mode=wconst),
        pl.BlockSpec((Hp, Dp), lambda i: (0, 0), pipeline_mode=wconst),
        pl.BlockSpec((1, Dp), lambda i: (0, 0), pipeline_mode=wconst),
    ]

    flops = 2 * B * ((Dx + Dt) * Hp + Hp * Hp + Hp * Dp)
    bytes_accessed = sum(int(a.size) * a.dtype.itemsize for a in args) \
        + B * Dp * out_item
    cost = pl.CostEstimate(flops=int(flops), transcendentals=0,
                           bytes_accessed=int(bytes_accessed))

    out = pl.pallas_call(
        _make_mlp_kernel(has_t, use_bf16),
        out_shape=jax.ShapeDtypeStruct((B, Dp), x.dtype),
        grid_spec=pltpu.PrefetchScalarGridSpec(
            num_scalar_prefetch=0,
            grid=grid,
            in_specs=in_specs,
            out_specs=pl.BlockSpec((tile_b, Dp), lambda i: (i, 0)),
        ),
        compiler_params=pltpu.CompilerParams(
            dimension_semantics=("parallel",),
            vmem_limit_bytes=int(vmem_limit)),
        cost_estimate=cost,
    )(*args)
    return out[:, :Dout] if pad_out else out


def init_params(key, input_dim, hidden_dim, output_dim, dtype=jnp.float32):
    """Deterministic init (uniform, fan-in scaled like PyTorch's default)."""
    ks = jax.random.split(key, 6)

    def lin(kw, kb, fan_in, fan_out):
        bound = 1.0 / jnp.sqrt(fan_in)
        w = jax.random.uniform(kw, (fan_in, fan_out), dtype, -bound, bound)
        b = jax.random.uniform(kb, (1, fan_out), dtype, -bound, bound)
        return w, b

    w1, b1 = lin(ks[0], ks[1], input_dim, hidden_dim)
    w2, b2 = lin(ks[2], ks[3], hidden_dim, hidden_dim)
    w3, b3 = lin(ks[4], ks[5], hidden_dim, output_dim)
    return (w1, b1, w2, b2, w3, b3)


def mlp_reference(x, params, t=None):
    inputs = jnp.concatenate([x, t], axis=-1) if t is not None else x
    w1, b1, w2, b2, w3, b3 = params
    h = jax.nn.relu(inputs @ w1 + b1)
    h = h + jax.nn.relu(h @ w2 + b2)
    return h @ w3 + b3


if __name__ == "__main__":
    # small shapes: batch=8, x_dim=12, t_dim=4 -> input_dim=16, hidden=32, output=4
    batch, x_dim, t_dim = 8, 12, 4
    input_dim, hidden_dim, output_dim = x_dim + t_dim, 32, 4

    key = jax.random.PRNGKey(0)
    kx, kt, kp = jax.random.split(key, 3)
    x = jax.random.normal(kx, (batch, x_dim), jnp.float32)
    t = jax.random.normal(kt, (batch, t_dim), jnp.float32)
    params = init_params(kp, input_dim, hidden_dim, output_dim)

    y_ref = mlp_reference(x, params, t)

    # f32 MXU path: should match the reference tightly.
    y32 = jax.block_until_ready(mlp_forward(x, params, t, use_bf16=False))
    assert y32.shape == (batch, output_dim)
    assert jnp.allclose(y32, y_ref, atol=1e-4, rtol=1e-4), "f32 mismatch vs reference"

    # bf16 MXU inputs with f32 accumulate (default fast path): looser tolerance.
    ybf = jax.block_until_ready(mlp_forward(x, params, t))
    assert ybf.shape == (batch, output_dim)
    assert jnp.allclose(ybf, y_ref, atol=5e-2, rtol=5e-2), "bf16 mismatch vs reference"

    # also exercise the t=None path (pre-concatenated input).
    xin = jnp.concatenate([x, t], axis=-1)
    y_nt = jax.block_until_ready(mlp_forward(xin, params, use_bf16=False))
    assert jnp.allclose(y_nt, y_ref, atol=1e-4, rtol=1e-4), "t=None mismatch vs reference"

    # larger, lane-aligned case: multi-step (even) grid, padded lane-dense output,
    # single-buffered weights and 3-deep activation buffering.
    B2, D2, H2, O2 = 192, 64, 128, 128
    k2x, k2p = jax.random.split(jax.random.PRNGKey(1))
    x2 = jax.random.normal(k2x, (B2, D2), jnp.float32)
    params2 = init_params(k2p, D2, H2, O2)
    y2_ref = mlp_reference(x2, params2)
    y2 = jax.block_until_ready(
        mlp_forward(x2, params2, use_bf16=False, act_buffers=3))
    assert y2.shape == (B2, O2)
    assert jnp.allclose(y2, y2_ref, atol=1e-3, rtol=1e-3), "multi-step mismatch"

    print("KERNEL_OK")
</pallas_src>

<mosaic_0001>
module attributes {stable_mosaic.version = 11 : i64} {
  func.func @kernel(%arg0: i32, %arg1: memref<8x12xf32, #tpu.memory_space<vmem>>, %arg2: memref<8x4xf32, #tpu.memory_space<vmem>>, %arg3: memref<12x128xf32, #tpu.memory_space<vmem>>, %arg4: memref<4x128xf32, #tpu.memory_space<vmem>>, %arg5: memref<1x128xf32, #tpu.memory_space<vmem>>, %arg6: memref<128x128xf32, #tpu.memory_space<vmem>>, %arg7: memref<1x128xf32, #tpu.memory_space<vmem>>, %arg8: memref<128x4xf32, #tpu.memory_space<vmem>>, %arg9: memref<1x4xf32, #tpu.memory_space<vmem>>, %arg10: memref<8x4xf32, #tpu.memory_space<vmem>>) attributes {dimension_semantics = [#tpu.dimension_semantics<parallel>], iteration_bounds = array<i64: 1>, scalar_prefetch = 0 : i64, scratch_operands = 0 : i64, tpu.core_type = #tpu.core_type<tc>, window_params = [{pipeline_mode = #tpu.pipeline_mode<double_buffered>, transform_indices = @transform_0, window_bounds = array<i64: 8, 12>}, {pipeline_mode = #tpu.pipeline_mode<double_buffered>, transform_indices = @transform_1, window_bounds = array<i64: 8, 4>}, {pipeline_mode = #tpu.pipeline_mode<synchronous>, transform_indices = @transform_2, window_bounds = array<i64: 12, 128>}, {pipeline_mode = #tpu.pipeline_mode<synchronous>, transform_indices = @transform_3, window_bounds = array<i64: 4, 128>}, {pipeline_mode = #tpu.pipeline_mode<synchronous>, transform_indices = @transform_4, window_bounds = array<i64: 1, 128>}, {pipeline_mode = #tpu.pipeline_mode<synchronous>, transform_indices = @transform_5, window_bounds = array<i64: 128, 128>}, {pipeline_mode = #tpu.pipeline_mode<synchronous>, transform_indices = @transform_6, window_bounds = array<i64: 1, 128>}, {pipeline_mode = #tpu.pipeline_mode<synchronous>, transform_indices = @transform_7, window_bounds = array<i64: 128, 4>}, {pipeline_mode = #tpu.pipeline_mode<synchronous>, transform_indices = @transform_8, window_bounds = array<i64: 1, 4>}, {transform_indices = @transform_9, window_bounds = array<i64: 8, 4>}]} {
    %c0 = arith.constant 0 : index
    %c0_0 = arith.constant 0 : index
    %0 = vector.load %arg1[%c0, %c0_0] : memref<8x12xf32, #tpu.memory_space<vmem>>, vector<8x12xf32>
    %c0_1 = arith.constant 0 : index
    %c0_2 = arith.constant 0 : index
    %1 = vector.load %arg3[%c0_1, %c0_2] : memref<12x128xf32, #tpu.memory_space<vmem>>, vector<12x128xf32>
    %cst = arith.constant dense<0.000000e+00> : vector<8x128xf32>
    %2 = tpu.matmul %0, %1, %cst {dimension_numbers = #tpu.dot_dimension_numbers<[1], [0], [0], [1], [0, 0, 1, 1], [], []>} : vector<8x12xf32>, vector<12x128xf32>, vector<8x128xf32> -> vector<8x128xf32>
    %c0_3 = arith.constant 0 : index
    %c0_4 = arith.constant 0 : index
    %3 = vector.load %arg2[%c0_3, %c0_4] : memref<8x4xf32, #tpu.memory_space<vmem>>, vector<8x4xf32>
    %c0_5 = arith.constant 0 : index
    %c0_6 = arith.constant 0 : index
    %4 = vector.load %arg4[%c0_5, %c0_6] : memref<4x128xf32, #tpu.memory_space<vmem>>, vector<4x128xf32>
    %cst_7 = arith.constant dense<0.000000e+00> : vector<8x128xf32>
    %5 = tpu.matmul %3, %4, %cst_7 {dimension_numbers = #tpu.dot_dimension_numbers<[1], [0], [0], [1], [0, 0, 1, 1], [], []>} : vector<8x4xf32>, vector<4x128xf32>, vector<8x128xf32> -> vector<8x128xf32>
    %6 = arith.addf %2, %5 : vector<8x128xf32>
    %c0_8 = arith.constant 0 : index
    %c0_9 = arith.constant 0 : index
    %7 = vector.load %arg5[%c0_8, %c0_9] : memref<1x128xf32, #tpu.memory_space<vmem>>, vector<1x128xf32>
    %8 = vector.broadcast %7 : vector<1x128xf32> to vector<8x128xf32>
    %9 = arith.addf %6, %8 : vector<8x128xf32>
    %cst_10 = arith.constant 0.000000e+00 : f32
    %10 = vector.broadcast %cst_10 : f32 to vector<8x128xf32>
    %11 = arith.maximumf %9, %10 : vector<8x128xf32>
    %c0_11 = arith.constant 0 : index
    %c0_12 = arith.constant 0 : index
    %12 = vector.load %arg6[%c0_11, %c0_12] : memref<128x128xf32, #tpu.memory_space<vmem>>, vector<128x128xf32>
    %cst_13 = arith.constant dense<0.000000e+00> : vector<8x128xf32>
    %13 = tpu.matmul %11, %12, %cst_13 {dimension_numbers = #tpu.dot_dimension_numbers<[1], [0], [0], [1], [0, 0, 1, 1], [], []>} : vector<8x128xf32>, vector<128x128xf32>, vector<8x128xf32> -> vector<8x128xf32>
    %c0_14 = arith.constant 0 : index
    %c0_15 = arith.constant 0 : index
    %14 = vector.load %arg7[%c0_14, %c0_15] : memref<1x128xf32, #tpu.memory_space<vmem>>, vector<1x128xf32>
    %15 = vector.broadcast %14 : vector<1x128xf32> to vector<8x128xf32>
    %16 = arith.addf %13, %15 : vector<8x128xf32>
    %cst_16 = arith.constant 0.000000e+00 : f32
    %17 = vector.broadcast %cst_16 : f32 to vector<8x128xf32>
    %18 = arith.maximumf %16, %17 : vector<8x128xf32>
    %19 = arith.addf %11, %18 : vector<8x128xf32>
    %c0_17 = arith.constant 0 : index
    %c0_18 = arith.constant 0 : index
    %20 = vector.load %arg8[%c0_17, %c0_18] : memref<128x4xf32, #tpu.memory_space<vmem>>, vector<128x4xf32>
    %cst_19 = arith.constant dense<0.000000e+00> : vector<8x4xf32>
    %21 = tpu.matmul %19, %20, %cst_19 {dimension_numbers = #tpu.dot_dimension_numbers<[1], [0], [0], [1], [0, 0, 1, 1], [], []>} : vector<8x128xf32>, vector<128x4xf32>, vector<8x4xf32> -> vector<8x4xf32>
    %c0_20 = arith.constant 0 : index
    %c0_21 = arith.constant 0 : index
    %22 = vector.load %arg9[%c0_20, %c0_21] : memref<1x4xf32, #tpu.memory_space<vmem>>, vector<1x4xf32>
    %23 = vector.broadcast %22 : vector<1x4xf32> to vector<8x4xf32>
    %24 = arith.addf %21, %23 : vector<8x4xf32>
    %c0_22 = arith.constant 0 : index
    %c0_23 = arith.constant 0 : index
    %25 = vector.load %arg10[%c0_22, %c0_23] : memref<8x4xf32, #tpu.memory_space<vmem>>, vector<8x4xf32>
    tpu.vector_store %arg10[%c0_22, %c0_23], %24 {strides = array<i32>} : memref<8x4xf32, #tpu.memory_space<vmem>>, vector<8x4xf32>,
    return
  }
  func.func @transform_0(%arg0: i32) -> (i32, i32) {
    %c0_i32 = arith.constant 0 : i32
    %c0_i32_0 = arith.constant 0 : i32
    return %arg0, %c0_i32 : i32, i32
  }
  func.func @transform_1(%arg0: i32) -> (i32, i32) {
    %c0_i32 = arith.constant 0 : i32
    %c0_i32_0 = arith.constant 0 : i32
    return %arg0, %c0_i32 : i32, i32
  }
  func.func @transform_2(%arg0: i32) -> (i32, i32) {
    %c0_i32 = arith.constant 0 : i32
    %c0_i32_0 = arith.constant 0 : i32
    %c0_i32_1 = arith.constant 0 : i32
    return %c0_i32, %c0_i32_0 : i32, i32
  }
  func.func @transform_3(%arg0: i32) -> (i32, i32) {
    %c0_i32 = arith.constant 0 : i32
    %c0_i32_0 = arith.constant 0 : i32
    %c0_i32_1 = arith.constant 0 : i32
    return %c0_i32, %c0_i32_0 : i32, i32
  }
  func.func @transform_4(%arg0: i32) -> (i32, i32) {
    %c0_i32 = arith.constant 0 : i32
    %c0_i32_0 = arith.constant 0 : i32
    %c0_i32_1 = arith.constant 0 : i32
    return %c0_i32, %c0_i32_0 : i32, i32
  }
  func.func @transform_5(%arg0: i32) -> (i32, i32) {
    %c0_i32 = arith.constant 0 : i32
    %c0_i32_0 = arith.constant 0 : i32
    %c0_i32_1 = arith.constant 0 : i32
    return %c0_i32, %c0_i32_0 : i32, i32
  }
  func.func @transform_6(%arg0: i32) -> (i32, i32) {
    %c0_i32 = arith.constant 0 : i32
    %c0_i32_0 = arith.constant 0 : i32
    %c0_i32_1 = arith.constant 0 : i32
    return %c0_i32, %c0_i32_0 : i32, i32
  }
  func.func @transform_7(%arg0: i32) -> (i32, i32) {
    %c0_i32 = arith.constant 0 : i32
    %c0_i32_0 = arith.constant 0 : i32
    %c0_i32_1 = arith.constant 0 : i32
    return %c0_i32, %c0_i32_0 : i32, i32
  }
  func.func @transform_8(%arg0: i32) -> (i32, i32) {
    %c0_i32 = arith.constant 0 : i32
    %c0_i32_0 = arith.constant 0 : i32
    %c0_i32_1 = arith.constant 0 : i32
    return %c0_i32, %c0_i32_0 : i32, i32
  }
  func.func @transform_9(%arg0: i32) -> (i32, i32) {
    %c0_i32 = arith.constant 0 : i32
    %c0_i32_0 = arith.constant 0 : i32
    return %arg0, %c0_i32 : i32, i32
  }
}

</mosaic_0001>

<llo_original>
// kernel: tpu_custom_call.1
$region0: #{tpu_custom_call.1}
  #allocation0 [shape = 'u32[]', space=smem, size = 0x4, offset = 0x4, fixed_abs, tag = 'smem constant byte address 0x4 - core index']
  #allocation1 [shape = 'u32[144,128]{1,0:T(1,128)}', space=vmem, size = 0x12000, scoped, tag = 'internal scratch']
  %s0 = inlined_call_operand.vmem [shape: f32[8,12], index: 0, kind: input, shape index: {}]
  %s1 = inlined_call_operand.vmem [shape: f32[8,4], index: 1, kind: input, shape index: {}]
  %s2 = inlined_call_operand.vmem [shape: f32[12,128], index: 2, kind: input, shape index: {}]
  %s3 = inlined_call_operand.hbm [shape: f32[4,128], index: 3, kind: input, shape index: {}]
  %s4 = inlined_call_operand.hbm [shape: f32[1,128], index: 4, kind: input, shape index: {}]
  %s5 = inlined_call_operand.vmem [shape: f32[128,128], index: 5, kind: input, shape index: {}]
  %s6 = inlined_call_operand.hbm [shape: f32[1,128], index: 6, kind: input, shape index: {}]
  %s7 = inlined_call_operand.vmem [shape: f32[128,4], index: 7, kind: input, shape index: {}]
  %s8 = inlined_call_operand.vmem [shape: f32[1,4], index: 8, kind: input, shape index: {}]
  %s9 = inlined_call_operand.vmem [shape: f32[8,4], index: 9, kind: output, shape index: {}]
  %s10 = sld [smem:[#allocation0]]
  $region58: #{tpu_custom_call.1} parent=0
    _
  %s12 = ssub.s32 1, %s10
  %s13 = scalar_select 0, %s12, %s10
  $region1: #{tpu_custom_call.1} parent=0
    #allocation2 [shape = 'u8[2048]{0}', space=vmem, size = 0x800, scoped, tag = 'input window, operand 3, single buffered']
    #allocation3 [shape = 's32[1]{0}', space=sflag, size = 0x4, scoped, tag = 'scoped memory for tpu_custom_call.1']
    #allocation4 [shape = 'u8[512]{0}', space=vmem, size = 0x400, scoped, tag = 'input window, operand 4, single buffered']
    #allocation5 [shape = 's32[1]{0}', space=sflag, size = 0x4, scoped, tag = 'scoped memory for tpu_custom_call.1']
    #allocation6 [shape = 'u8[512]{0}', space=vmem, size = 0x400, scoped, tag = 'input window, operand 6, single buffered']
    %14 = vsyncpa [#allocation3], 0
    %15 = vsyncpa [#allocation5], 0
    // Predicated region
    $region2: #{tpu_custom_call.1} parent=1 // pred_check
      _
    $region3: #{tpu_custom_call.1} parent=1 // pred_check_branch
      %17 = sbr.rel (0) target = $region5
    $region4: #{tpu_custom_call.1} parent=1 // pred_region
      _
    $region5: #{tpu_custom_call.1} parent=1 // pred_fallthru
      _
    // Predicated region
    $region6: #{tpu_custom_call.1} parent=1 // pred_check
      _
    $region7: #{tpu_custom_call.1} parent=1 // pred_check_branch
      %19 = sbr.rel (0) target = $region9
    $region8: #{tpu_custom_call.1} parent=1 // pred_region
      _
    $region9: #{tpu_custom_call.1} parent=1 // pred_fallthru
      _
    // Predicated region
    $region10: #{tpu_custom_call.1} parent=1 // pred_check
      _
    $region11: #{tpu_custom_call.1} parent=1 // pred_check_branch
      %21 = sbr.rel (0) target = $region13
    $region12: #{tpu_custom_call.1} parent=1 // pred_region
      _
    $region13: #{tpu_custom_call.1} parent=1 // pred_fallthru
      _
    // Predicated region
    $region14: #{tpu_custom_call.1} parent=1 // pred_check
      _
    $region15: #{tpu_custom_call.1} parent=1 // pred_check_branch
      %23 = sbr.rel (0) target = $region17
    $region16: #{tpu_custom_call.1} parent=1 // pred_region
      %s25 = ssub.s32 64, 64
      %26 = vsyncadd [#allocation3], %s25
      %s28 = sshll.u32 [#allocation2], 4
      %s29 = int_to_ptr.vmem [resolvable:$true] %s28
      %31 = dma.hbm_to_vmem [thread:$0]  %s3, 64, %s29, [#allocation3]
    $region17: #{tpu_custom_call.1} parent=1 // pred_fallthru
      _
    // Predicated region
    $region18: #{tpu_custom_call.1} parent=1 // pred_check
      _
    $region19: #{tpu_custom_call.1} parent=1 // pred_check_branch
      %33 = sbr.rel (0) target = $region21
    $region20: #{tpu_custom_call.1} parent=1 // pred_region
      %s35 = ssub.s32 16, 16
      %36 = vsyncadd [#allocation5], %s35
      %s38 = sshll.u32 [#allocation4], 4
      %s39 = int_to_ptr.vmem [resolvable:$true] %s38
      %41 = dma.hbm_to_vmem [thread:$0]  %s4, 16, %s39, [#allocation5]
    $region21: #{tpu_custom_call.1} parent=1 // pred_fallthru
      _
    // Predicated region
    $region22: #{tpu_custom_call.1} parent=1 // pred_check
      _
    $region23: #{tpu_custom_call.1} parent=1 // pred_check_branch
      %43 = sbr.rel (0) target = $region25
    $region24: #{tpu_custom_call.1} parent=1 // pred_region
      _
    $region25: #{tpu_custom_call.1} parent=1 // pred_fallthru
      _
    // Predicated region
    $region26: #{tpu_custom_call.1} parent=1 // pred_check
      _
    $region27: #{tpu_custom_call.1} parent=1 // pred_check_branch
      %45 = sbr.rel (0) target = $region29
    $region28: #{tpu_custom_call.1} parent=1 // pred_region
      %s47 = ssub.s32 16, 16
      %48 = vsyncadd [#allocation5], %s47
      %s50 = sshll.u32 [#allocation6], 4
      %s51 = int_to_ptr.vmem [resolvable:$true] %s50
      %53 = dma.hbm_to_vmem [thread:$0]  %s6, 16, %s51, [#allocation5]
    $region29: #{tpu_custom_call.1} parent=1 // pred_fallthru
      _
    // Predicated region
    $region30: #{tpu_custom_call.1} parent=1 // pred_check
      _
    $region31: #{tpu_custom_call.1} parent=1 // pred_check_branch
      %55 = sbr.rel (0) target = $region33
    $region32: #{tpu_custom_call.1} parent=1 // pred_region
      _
    $region33: #{tpu_custom_call.1} parent=1 // pred_fallthru
      _
    // Predicated region
    $region34: #{tpu_custom_call.1} parent=1 // pred_check
      _
    $region35: #{tpu_custom_call.1} parent=1 // pred_check_branch
      %57 = sbr.rel (0) target = $region37
    $region36: #{tpu_custom_call.1} parent=1 // pred_region
      _
    $region37: #{tpu_custom_call.1} parent=1 // pred_fallthru
      _
    // Predicated region
    $region38: #{tpu_custom_call.1} parent=1 // pred_check
      _
    $region39: #{tpu_custom_call.1} parent=1 // pred_check_branch
      %59 = sbr.rel (0) target = $region41
    $region40: #{tpu_custom_call.1} parent=1 // pred_region
      %60 = dma.done [#allocation3], 64
    $region41: #{tpu_custom_call.1} parent=1 // pred_fallthru
      _
    // Predicated region
    $region42: #{tpu_custom_call.1} parent=1 // pred_check
      _
    $region43: #{tpu_custom_call.1} parent=1 // pred_check_branch
      %62 = sbr.rel (0) target = $region45
    $region44: #{tpu_custom_call.1} parent=1 // pred_region
      %63 = dma.done [#allocation5], 16
    $region45: #{tpu_custom_call.1} parent=1 // pred_fallthru
      _
    // Predicated region
    $region46: #{tpu_custom_call.1} parent=1 // pred_check
      _
    $region47: #{tpu_custom_call.1} parent=1 // pred_check_branch
      %65 = sbr.rel (0) target = $region49
    $region48: #{tpu_custom_call.1} parent=1 // pred_region
      %66 = dma.done [#allocation5], 16
    $region49: #{tpu_custom_call.1} parent=1 // pred_fallthru
      _
    %v67 = vld [vmem:[%s0] sm:$0xff]
    %v68 = vld [vmem:[%s2] sm:$0xff]
    %v69 = vld [vmem:[%s2 + $0x8] sm:$0xf]
    %v70 = vld [vmem:[%s1] sm:$0xff]
    %v71 = vld [vmem:[#allocation2] sm:$0xf]
    %vm72 = vcmask 31744
    %v74 = vsel %vm72, %v70, 0
    %vm76 = vcmask 1043456
    %v78 = vsel %vm76, %v71, 0
    %80 = vmatprep.subr.mxu0 0.0
    %81 = vmatpush1.msra.mxu0 0.0
    %82 = vmatprep.subr.mxu0 0.0
    %83 = vmatpush1.msra.mxu0 0.0
    %84 = vmatprep.subr.mxu0 0.0
    %85 = vmatpush1.msra.mxu0 0.0
    %86 = vmatprep.subr.mxu0 0.0
    %87 = vmatpush1.msra.mxu0 0.0
    %88 = vmatprep.subr.mxu0 0.0
    %89 = vmatpush1.msra.mxu0 0.0
    %90 = vmatprep.subr.mxu0 0.0
    %91 = vmatpush1.msra.mxu0 0.0
    %92 = vmatprep.subr.mxu0 0.0
    %93 = vmatpush1.msra.mxu0 0.0
    %94 = vmatprep.subr.mxu0 0.0
    %95 = vmatpush1.msra.mxu0 0.0
    %96 = vmatprep.subr.mxu0 0.0
    %97 = vmatpush1.msra.mxu0 0.0
    %98 = vmatprep.subr.mxu0 0.0
    %99 = vmatpush1.msra.mxu0 0.0
    %100 = vmatprep.subr.mxu0 0.0
    %101 = vmatpush1.msra.mxu0 0.0
    %102 = vmatprep.subr.mxu0 0.0
    %103 = vmatpush1.msra.mxu0 0.0
    %104 = vmatprep.subr.mxu0 0.0
    %105 = vmatpush1.msra.mxu0 0.0
    %106 = vmatprep.subr.mxu0 0.0
    %107 = vmatpush1.msra.mxu0 0.0
    %108 = vmatprep.subr.mxu0 0.0
    %109 = vmatpush1.msra.mxu0 0.0
    %110 = vmatprep.subr.mxu0 0.0
    %111 = vmatpush1.msra.mxu0 %v78
    %112 = vmatprep.subr.mxu0 0.0
    %113 = vmatpush2.msra.mxu0 0.0
    %114 = vmatprep.subr.mxu0 0.0
    %115 = vmatpush2.msra.mxu0 0.0
    %116 = vmatprep.subr.mxu0 0.0
    %117 = vmatpush2.msra.mxu0 0.0
    %118 = vmatprep.subr.mxu0 0.0
    %119 = vmatpush2.msra.mxu0 0.0
    %120 = vmatprep.subr.mxu0 0.0
    %121 = vmatpush2.msra.mxu0 0.0
    %122 = vmatprep.subr.mxu0 0.0
    %123 = vmatpush2.msra.mxu0 0.0
    %124 = vmatprep.subr.mxu0 0.0
    %125 = vmatpush2.msra.mxu0 0.0
    %126 = vmatprep.subr.mxu0 0.0
    %127 = vmatpush2.msra.mxu0 0.0
    %128 = vmatprep.subr.mxu0 0.0
    %129 = vmatpush2.msra.mxu0 0.0
    %130 = vmatprep.subr.mxu0 0.0
    %131 = vmatpush2.msra.mxu0 0.0
    %132 = vmatprep.subr.mxu0 0.0
    %133 = vmatpush2.msra.mxu0 0.0
    %134 = vmatprep.subr.mxu0 0.0
    %135 = vmatpush2.msra.mxu0 0.0
    %136 = vmatprep.subr.mxu0 0.0
    %137 = vmatpush2.msra.mxu0 0.0
    %138 = vmatprep.subr.mxu0 0.0
    %139 = vmatpush2.msra.mxu0 0.0
    %140 = vmatprep.subr.mxu0 0.0
    %141 = vmatpush2.msra.mxu0 0.0
    %142 = vmatprep.subr.mxu0 0.0
    %143 = vmatpush2.msra.mxu0 0.0
    %144 = vmatprep.mubr.f32.mxu0 0.0
    %145 = vmatmul.mubr.f32.gmra.mxu0 %v74
    %v146 = vpop.f32.mrf.mxu0
    %v147 = vadd.f32 0.0, %v146
    %v148 = vpop.f32.mrf.mxu0
    %149 = vdwg.mxu0
    %vm150 = vcmask 97280
    %v152 = vsel %vm150, %v67, 0
    %v155 = vsel %vm76, %v69, 0
    %157 = vmatprep.subr.mxu0 0.0
    %158 = vmatpush1.msra.mxu0 0.0
    %159 = vmatprep.subr.mxu0 0.0
    %160 = vmatpush1.msra.mxu0 0.0
    %161 = vmatprep.subr.mxu0 0.0
    %162 = vmatpush1.msra.mxu0 0.0
    %163 = vmatprep.subr.mxu0 0.0
    %164 = vmatpush1.msra.mxu0 0.0
    %165 = vmatprep.subr.mxu0 0.0
    %166 = vmatpush1.msra.mxu0 0.0
    %167 = vmatprep.subr.mxu0 0.0
    %168 = vmatpush1.msra.mxu0 0.0
    %169 = vmatprep.subr.mxu0 0.0
    %170 = vmatpush1.msra.mxu0 0.0
    %171 = vmatprep.subr.mxu0 0.0
    %172 = vmatpush1.msra.mxu0 0.0
    %173 = vmatprep.subr.mxu0 0.0
    %174 = vmatpush1.msra.mxu0 0.0
    %175 = vmatprep.subr.mxu0 0.0
    %176 = vmatpush1.msra.mxu0 0.0
    %177 = vmatprep.subr.mxu0 0.0
    %178 = vmatpush1.msra.mxu0 0.0
    %179 = vmatprep.subr.mxu0 0.0
    %180 = vmatpush1.msra.mxu0 0.0
    %181 = vmatprep.subr.mxu0 0.0
    %182 = vmatpush1.msra.mxu0 0.0
    %183 = vmatprep.subr.mxu0 0.0
    %184 = vmatpush1.msra.mxu0 0.0
    %185 = vmatprep.subr.mxu0 0.0
    %186 = vmatpush1.msra.mxu0 %v155
    %187 = vmatprep.subr.mxu0 0.0
    %188 = vmatpush1.msra.mxu0 %v68
    %189 = vmatprep.subr.mxu0 0.0
    %190 = vmatpush2.msra.mxu0 0.0
    %191 = vmatprep.subr.mxu0 0.0
    %192 = vmatpush2.msra.mxu0 0.0
    %193 = vmatprep.subr.mxu0 0.0
    %194 = vmatpush2.msra.mxu0 0.0
    %195 = vmatprep.subr.mxu0 0.0
    %196 = vmatpush2.msra.mxu0 0.0
    %197 = vmatprep.subr.mxu0 0.0
    %198 = vmatpush2.msra.mxu0 0.0
    %199 = vmatprep.subr.mxu0 0.0
    %200 = vmatpush2.msra.mxu0 0.0
    %201 = vmatprep.subr.mxu0 0.0
    %202 = vmatpush2.msra.mxu0 0.0
    %203 = vmatprep.subr.mxu0 0.0
    %204 = vmatpush2.msra.mxu0 0.0
    %205 = vmatprep.subr.mxu0 0.0
    %206 = vmatpush2.msra.mxu0 0.0
    %207 = vmatprep.subr.mxu0 0.0
    %208 = vmatpush2.msra.mxu0 0.0
    %209 = vmatprep.subr.mxu0 0.0
    %210 = vmatpush2.msra.mxu0 0.0
    %211 = vmatprep.subr.mxu0 0.0
    %212 = vmatpush2.msra.mxu0 0.0
    %213 = vmatprep.subr.mxu0 0.0
    %214 = vmatpush2.msra.mxu0 0.0
    %215 = vmatprep.subr.mxu0 0.0
    %216 = vmatpush2.msra.mxu0 0.0
    %217 = vmatprep.subr.mxu0 0.0
    %218 = vmatpush2.msra.mxu0 0.0
    %219 = vmatprep.subr.mxu0 0.0
    %220 = vmatpush2.msra.mxu0 0.0
    %221 = vmatprep.mubr.f32.mxu0 0.0
    %222 = vmatmul.mubr.f32.gmra.mxu0 %v152
    %v223 = vpop.f32.mrf.mxu0
    %v224 = vadd.f32 %v147, %v223
    %v225 = vpop.f32.mrf.mxu0
    %226 = vdwg.mxu0
    %v227 = vld [vmem:[#allocation4] sm:$0x1]
    %v229 = vlaneseq
    %v230 = vshrl.u32 %v229, 7
    %v231 = vsub.s32 0, %v230
    %v232 = vrot.slane %v227, %v231
    %v234 = vadd.f32 %v224, %v232
    %v235 = vmax.f32 %v234, 0.0
    %v236 = vld [vmem:[%s5] sm:$0xff]
    %v237 = vld [vmem:[%s5 + $0x8] sm:$0xff]
    %v238 = vld [vmem:[%s5 + $0x10] sm:$0xff]
    %v239 = vld [vmem:[%s5 + $0x18] sm:$0xff]
    %v240 = vld [vmem:[%s5 + $0x20] sm:$0xff]
    %v241 = vld [vmem:[%s5 + $0x28] sm:$0xff]
    %v242 = vld [vmem:[%s5 + $0x30] sm:$0xff]
    %v243 = vld [vmem:[%s5 + $0x38] sm:$0xff]
    %v244 = vld [vmem:[%s5 + $0x40] sm:$0xff]
    %v245 = vld [vmem:[%s5 + $0x48] sm:$0xff]
    %v246 = vld [vmem:[%s5 + $0x50] sm:$0xff]
    %v247 = vld [vmem:[%s5 + $0x58] sm:$0xff]
    %v248 = vld [vmem:[%s5 + $0x60] sm:$0xff]
    %v249 = vld [vmem:[%s5 + $0x68] sm:$0xff]
    %v250 = vld [vmem:[%s5 + $0x70] sm:$0xff]
    %v251 = vld [vmem:[%s5 + $0x78] sm:$0xff]
    %v252 = vld [vmem:[#allocation6] sm:$0x1]
    %v254 = vlaneseq
    %v255 = vshrl.u32 %v254, 7
    %v256 = vsub.s32 0, %v255
    %v257 = vrot.slane %v252, %v256
    %259 = vmatprep.subr.mxu0 0.0
    %260 = vmatpush1.msra.mxu0 %v251
    %261 = vmatprep.subr.mxu0 0.0
    %262 = vmatpush1.msra.mxu0 %v250
    %263 = vmatprep.subr.mxu0 0.0
    %264 = vmatpush1.msra.mxu0 %v249
    %265 = vmatprep.subr.mxu0 0.0
    %266 = vmatpush1.msra.mxu0 %v248
    %267 = vmatprep.subr.mxu0 0.0
    %268 = vmatpush1.msra.mxu0 %v247
    %269 = vmatprep.subr.mxu0 0.0
    %270 = vmatpush1.msra.mxu0 %v246
    %271 = vmatprep.subr.mxu0 0.0
    %272 = vmatpush1.msra.mxu0 %v245
    %273 = vmatprep.subr.mxu0 0.0
    %274 = vmatpush1.msra.mxu0 %v244
    %275 = vmatprep.subr.mxu0 0.0
    %276 = vmatpush1.msra.mxu0 %v243
    %277 = vmatprep.subr.mxu0 0.0
    %278 = vmatpush1.msra.mxu0 %v242
    %279 = vmatprep.subr.mxu0 0.0
    %280 = vmatpush1.msra.mxu0 %v241
    %281 = vmatprep.subr.mxu0 0.0
    %282 = vmatpush1.msra.mxu0 %v240
    %283 = vmatprep.subr.mxu0 0.0
    %284 = vmatpush1.msra.mxu0 %v239
    %285 = vmatprep.subr.mxu0 0.0
    %286 = vmatpush1.msra.mxu0 %v238
    %287 = vmatprep.subr.mxu0 0.0
    %288 = vmatpush1.msra.mxu0 %v237
    %289 = vmatprep.subr.mxu0 0.0
    %290 = vmatpush1.msra.mxu0 %v236
    %291 = vmatprep.subr.mxu0 0.0
    %292 = vmatpush2.msra.mxu0 0.0
    %293 = vmatprep.subr.mxu0 0.0
    %294 = vmatpush2.msra.mxu0 0.0
    %295 = vmatprep.subr.mxu0 0.0
    %296 = vmatpush2.msra.mxu0 0.0
    %297 = vmatprep.subr.mxu0 0.0
    %298 = vmatpush2.msra.mxu0 0.0
    %299 = vmatprep.subr.mxu0 0.0
    %300 = vmatpush2.msra.mxu0 0.0
    %301 = vmatprep.subr.mxu0 0.0
    %302 = vmatpush2.msra.mxu0 0.0
    %303 = vmatprep.subr.mxu0 0.0
    %304 = vmatpush2.msra.mxu0 0.0
    %305 = vmatprep.subr.mxu0 0.0
    %306 = vmatpush2.msra.mxu0 0.0
    %307 = vmatprep.subr.mxu0 0.0
    %308 = vmatpush2.msra.mxu0 0.0
    %309 = vmatprep.subr.mxu0 0.0
    %310 = vmatpush2.msra.mxu0 0.0
    %311 = vmatprep.subr.mxu0 0.0
    %312 = vmatpush2.msra.mxu0 0.0
    %313 = vmatprep.subr.mxu0 0.0
    %314 = vmatpush2.msra.mxu0 0.0
    %315 = vmatprep.subr.mxu0 0.0
    %316 = vmatpush2.msra.mxu0 0.0
    %317 = vmatprep.subr.mxu0 0.0
    %318 = vmatpush2.msra.mxu0 0.0
    %319 = vmatprep.subr.mxu0 0.0
    %320 = vmatpush2.msra.mxu0 0.0
    %321 = vmatprep.subr.mxu0 0.0
    %322 = vmatpush2.msra.mxu0 0.0
    %323 = vmatprep.mubr.f32.mxu0 0.0
    %324 = vmatmul.mubr.f32.gmra.mxu0 %v235
    %v325 = vpop.f32.mrf.mxu0
    %v326 = vadd.f32 %v257, %v325
    %v327 = vpop.f32.mrf.mxu0
    %328 = vdwg.mxu0
    %v329 = vmax.f32 %v326, 0.0
    %v330 = vadd.f32 %v235, %v329
    %v331 = vld [vmem:[%s7] sm:$0xff]
    %v332 = vld [vmem:[%s7 + $0x8] sm:$0xff]
    %v333 = vld [vmem:[%s7 + $0x10] sm:$0xff]
    %v334 = vld [vmem:[%s7 + $0x18] sm:$0xff]
    %v335 = vld [vmem:[%s7 + $0x20] sm:$0xff]
    %v336 = vld [vmem:[%s7 + $0x28] sm:$0xff]
    %v337 = vld [vmem:[%s7 + $0x30] sm:$0xff]
    %v338 = vld [vmem:[%s7 + $0x38] sm:$0xff]
    %v339 = vld [vmem:[%s7 + $0x40] sm:$0xff]
    %v340 = vld [vmem:[%s7 + $0x48] sm:$0xff]
    %v341 = vld [vmem:[%s7 + $0x50] sm:$0xff]
    %v342 = vld [vmem:[%s7 + $0x58] sm:$0xff]
    %v343 = vld [vmem:[%s7 + $0x60] sm:$0xff]
    %v344 = vld [vmem:[%s7 + $0x68] sm:$0xff]
    %v345 = vld [vmem:[%s7 + $0x70] sm:$0xff]
    %v346 = vld [vmem:[%s7 + $0x78] sm:$0xff]
    %v347 = vld [vmem:[%s8] sm:$0x1]
    %v349 = vlaneseq
    %v350 = vshrl.u32 %v349, 7
    %v351 = vsub.s32 0, %v350
    %v352 = vrot.slane %v347, %v351
    %354 = vmatprep.subr.mxu0 0.0
    %355 = vmatpush1.msra.mxu0 %v346
    %356 = vmatprep.subr.mxu0 0.0
    %357 = vmatpush1.msra.mxu0 %v345
    %358 = vmatprep.subr.mxu0 0.0
    %359 = vmatpush1.msra.mxu0 %v344
    %360 = vmatprep.subr.mxu0 0.0
    %361 = vmatpush1.msra.mxu0 %v343
    %362 = vmatprep.subr.mxu0 0.0
    %363 = vmatpush1.msra.mxu0 %v342
    %364 = vmatprep.subr.mxu0 0.0
    %365 = vmatpush1.msra.mxu0 %v341
    %366 = vmatprep.subr.mxu0 0.0
    %367 = vmatpush1.msra.mxu0 %v340
    %368 = vmatprep.subr.mxu0 0.0
    %369 = vmatpush1.msra.mxu0 %v339
    %370 = vmatprep.subr.mxu0 0.0
    %371 = vmatpush1.msra.mxu0 %v338
    %372 = vmatprep.subr.mxu0 0.0
    %373 = vmatpush1.msra.mxu0 %v337
    %374 = vmatprep.subr.mxu0 0.0
    %375 = vmatpush1.msra.mxu0 %v336
    %376 = vmatprep.subr.mxu0 0.0
    %377 = vmatpush1.msra.mxu0 %v335
    %378 = vmatprep.subr.mxu0 0.0
    %379 = vmatpush1.msra.mxu0 %v334
    %380 = vmatprep.subr.mxu0 0.0
    %381 = vmatpush1.msra.mxu0 %v333
    %382 = vmatprep.subr.mxu0 0.0
    %383 = vmatpush1.msra.mxu0 %v332
    %384 = vmatprep.subr.mxu0 0.0
    %385 = vmatpush1.msra.mxu0 %v331
    %386 = vmatprep.subr.mxu0 0.0
    %387 = vmatpush2.msra.mxu0 0.0
    %388 = vmatprep.subr.mxu0 0.0
    %389 = vmatpush2.msra.mxu0 0.0
    %390 = vmatprep.subr.mxu0 0.0
    %391 = vmatpush2.msra.mxu0 0.0
    %392 = vmatprep.subr.mxu0 0.0
    %393 = vmatpush2.msra.mxu0 0.0
    %394 = vmatprep.subr.mxu0 0.0
    %395 = vmatpush2.msra.mxu0 0.0
    %396 = vmatprep.subr.mxu0 0.0
    %397 = vmatpush2.msra.mxu0 0.0
    %398 = vmatprep.subr.mxu0 0.0
    %399 = vmatpush2.msra.mxu0 0.0
    %400 = vmatprep.subr.mxu0 0.0
    %401 = vmatpush2.msra.mxu0 0.0
    %402 = vmatprep.subr.mxu0 0.0
    %403 = vmatpush2.msra.mxu0 0.0
    %404 = vmatprep.subr.mxu0 0.0
    %405 = vmatpush2.msra.mxu0 0.0
    %406 = vmatprep.subr.mxu0 0.0
    %407 = vmatpush2.msra.mxu0 0.0
    %408 = vmatprep.subr.mxu0 0.0
    %409 = vmatpush2.msra.mxu0 0.0
    %410 = vmatprep.subr.mxu0 0.0
    %411 = vmatpush2.msra.mxu0 0.0
    %412 = vmatprep.subr.mxu0 0.0
    %413 = vmatpush2.msra.mxu0 0.0
    %414 = vmatprep.subr.mxu0 0.0
    %415 = vmatpush2.msra.mxu0 0.0
    %416 = vmatprep.subr.mxu0 0.0
    %417 = vmatpush2.msra.mxu0 0.0
    %418 = vmatprep.mubr.f32.mxu0 0.0
    %419 = vmatmul.mubr.f32.gmra.mxu0 %v330
    %v420 = vpop.f32.mrf.mxu0
    %v421 = vadd.f32 %v352, %v420
    %v422 = vpop.f32.mrf.mxu0
    %423 = vdwg.mxu0
    %424 = vst.msk [vmem:[%s9] sm:$0xff] %vm72, %v421
    // Predicated region
    $region50: #{tpu_custom_call.1} parent=1 // pred_check
      _
    $region51: #{tpu_custom_call.1} parent=1 // pred_check_branch
      %426 = sbr.rel (0) target = $region53
    $region52: #{tpu_custom_call.1} parent=1 // pred_region
      _
    $region53: #{tpu_custom_call.1} parent=1 // pred_fallthru
      _
    // Predicated region
    $region54: #{tpu_custom_call.1} parent=1 // pred_check
      _
    $region55: #{tpu_custom_call.1} parent=1 // pred_check_branch
      %428 = sbr.rel (0) target = $region57
    $region56: #{tpu_custom_call.1} parent=1 // pred_region
      _
    $region57: #{tpu_custom_call.1} parent=1 // pred_fallthru
      _
    %429 = vsyncpa [#allocation3], 1
    %430 = vsyncpa [#allocation5], 1

</llo_original>
